<compile_context>
chip_gen: v5e
topology: v5e:2x2
jax: 0.10.0
libtpu: 0.0.40
codegen_flags: <defaults>
</compile_context>

<pallas_src>
import functools
import math

import jax
import jax.numpy as jnp
from jax import lax
from jax.experimental import pallas as pl
from jax.experimental.pallas import tpu as pltpu


def _pick_tile(n, cap):
    """Largest power-of-two tile <= cap that divides n (n must be a mult of 8)."""
    for t in (1024, 512, 256, 128, 64, 32, 16, 8):
        if t <= cap and n % t == 0:
            return t
    return n  # only reached if n is not a multiple of 8 (callers prevent this)


def _seq_tiling(S, cap=512, prefer=256):
    """Pick a sequence tile and a (possibly padded) sequence length.

    Returns (tile, S_pad) with tile a power of two >= 8, S_pad % tile == 0 and
    S_pad % 8 == 0. Prefers tiles >= 256 (v6e/v7x MXU is 256x256); pads S when
    no good divisor tile exists.
    """
    if S % 8 == 0:
        t = _pick_tile(S, cap)
        if t >= min(prefer, S):
            return t, S
    target = min(cap, max(8, pl.next_power_of_2(S)))
    s_pad = pl.cdiv(S, target) * target
    return target, s_pad


def _qkv_row_tile(rows, E, cap=1024, budget_bytes=40 * 1024 * 1024):
    """Row tile for the QKV projection, kept under a VMEM budget."""
    tm = _pick_tile(rows, cap)

    def vmem_bytes(t):
        x_tiles = 2 * (t * E * 2)            # bf16 input, double-buffered
        out_tiles = 2 * (t * 3 * E * 2)      # bf16 fused output, double-buffered
        weight = 2 * (E * 3 * E * 2)         # resident (E,3E) bf16 weight (2 bufs)
        bias = 2 * (3 * E * 4)
        return x_tiles + out_tiles + weight + bias

    while tm > 8 and vmem_bytes(tm) > budget_bytes:
        tm //= 2
    return tm


# --------------------------------------------------------------------------
# Kernel 1: fused QKV projection: (tm, E) @ (E, 3E) -> (tm, 3E) per row tile.
# The 1/sqrt(E) scale is already folded into the Q columns of the weight/bias.
# --------------------------------------------------------------------------
def _qkv_proj_kernel(x_ref, w_ref, b_ref, *out_refs, e_dim):
    y = jnp.dot(x_ref[...], w_ref[...],
                preferred_element_type=jnp.float32) + b_ref[...]   # (tm, 3E) f32
    if len(out_refs) == 1:
        # Lane-dense single wide store (E % 128 == 0 path).
        out_refs[0][...] = y.astype(out_refs[0].dtype)
    else:
        q_ref, k_ref, v_ref = out_refs
        q_ref[...] = y[:, :e_dim].astype(q_ref.dtype)
        k_ref[...] = y[:, e_dim:2 * e_dim].astype(k_ref.dtype)
        v_ref[...] = y[:, 2 * e_dim:].astype(v_ref.dtype)


# --------------------------------------------------------------------------
# Kernel 2: flash attention over grid (B, S_pad//tq, S_pad//tk), reduction
# axis (ki) last. m/l scratch is lane-dense (tq, 128); acc is (tq, E) f32.
# --------------------------------------------------------------------------
def _flash_attn_kernel(q_ref, k_ref, v_ref, o_ref, m_sc, l_sc, acc_sc, *,
                       kv_len, block_k):
    ki = pl.program_id(2)

    @pl.when(ki == 0)
    def _():
        m_sc[...] = jnp.full_like(m_sc, -jnp.inf)
        l_sc[...] = jnp.zeros_like(l_sc)
        acc_sc[...] = jnp.zeros_like(acc_sc)

    q = q_ref[0]                                          # (tq, E) bf16 (pre-scaled)
    k = k_ref[0]                                          # (tk, E) bf16
    # Contract last dims of both operands: no K transpose materialized.
    s = lax.dot_general(q, k, (((1,), (1,)), ((), ())),
                        preferred_element_type=jnp.float32)   # (tq, tk) f32

    if kv_len is not None:
        # Mask padded keys. Tiling guarantees every key tile holds >=1 real key.
        col = ki * block_k + lax.broadcasted_iota(jnp.int32, s.shape, 1)
        s = jnp.where(col < kv_len, s, -jnp.inf)

    m_prev = m_sc[...]                                    # (tq, 128)
    l_prev = l_sc[...]                                    # (tq, 128)
    m_next = jnp.maximum(m_prev, jnp.max(s, axis=-1, keepdims=True))
    alpha = jnp.exp(m_prev - m_next)                      # (tq, 128)
    p = jnp.exp(s - m_next[:, 0:1])                       # (tq, tk) f32

    l_sc[...] = alpha * l_prev + jnp.sum(p, axis=-1, keepdims=True)
    acc_sc[...] = alpha[:, 0:1] * acc_sc[...] + jnp.dot(
        p.astype(v_ref.dtype), v_ref[0], preferred_element_type=jnp.float32)
    m_sc[...] = m_next

    @pl.when(ki == pl.num_programs(2) - 1)
    def _():
        l = l_sc[...]
        inv_l = pl.reciprocal(l[:, 0:1], approx=True)     # EUP slot
        o_ref[0] = (acc_sc[...] * inv_l).astype(o_ref.dtype)


# --------------------------------------------------------------------------
# Wrapper.
# --------------------------------------------------------------------------
def self_attention_v1(x, wq, bq, wk, bk, wv, bv):
    """x: (B, S, E) float32; weights (E, E); biases (1, E). Returns (B, S, E)."""
    B, S, E = x.shape
    out_dtype = x.dtype
    scale = 1.0 / math.sqrt(E)

    # Fuse QKV parameters; fold 1/sqrt(E) into the Q projection (free).
    w_qkv = jnp.concatenate([wq * scale, wk, wv], axis=1).astype(jnp.bfloat16)
    b_qkv = jnp.concatenate([bq * scale, bk, bv], axis=1).astype(jnp.float32)

    # Sequence tiling: big tiles (>=256 when possible), pad + mask otherwise.
    tq, S_pad = _seq_tiling(S, cap=512, prefer=256)
    tk = tq
    # v7x megacore: keep at least 2 parallel blocks when possible.
    while tq > 8 and B * (S_pad // tq) < 2:
        tq //= 2

    if S_pad != S:
        x = jnp.pad(x, ((0, 0), (0, S_pad - S), (0, 0)))

    rows = B * S_pad
    tm = _qkv_row_tile(rows, E)
    x2d = x.reshape(rows, E).astype(jnp.bfloat16)

    fused_layout = (E % 128 == 0)   # lane-dense single (rows, 3E) output

    row_spec = pl.BlockSpec((tm, E), lambda i: (i, 0))
    w_spec = pl.BlockSpec((E, 3 * E), lambda i: (0, 0))     # grid-invariant
    b_spec = pl.BlockSpec((1, 3 * E), lambda i: (0, 0))

    if fused_layout:
        qkv_out_shape = jax.ShapeDtypeStruct((rows, 3 * E), jnp.bfloat16)
        qkv_out_specs = pl.BlockSpec((tm, 3 * E), lambda i: (i, 0))
    else:
        qkv_out_shape = tuple(
            jax.ShapeDtypeStruct((rows, E), jnp.bfloat16) for _ in range(3))
        qkv_out_specs = tuple(
            pl.BlockSpec((tm, E), lambda i: (i, 0)) for _ in range(3))

    qkv = pl.pallas_call(
        functools.partial(_qkv_proj_kernel, e_dim=E),
        out_shape=qkv_out_shape,
        grid_spec=pltpu.PrefetchScalarGridSpec(
            num_scalar_prefetch=0,
            grid=(rows // tm,),
            in_specs=[row_spec, w_spec, b_spec],
            out_specs=qkv_out_specs,
        ),
        compiler_params=pltpu.CompilerParams(
            dimension_semantics=("parallel",),
            vmem_limit_bytes=64 * 1024 * 1024),
    )(x2d, w_qkv, b_qkv)

    if fused_layout:
        qkv3 = qkv.reshape(B, S_pad, 3 * E)
        flash_in = (qkv3, qkv3, qkv3)
        cols = (0, 1, 2)     # Q/K/V column-block indices inside the fused array
    else:
        q3, k3, v3 = (a.reshape(B, S_pad, E) for a in qkv)
        flash_in = (q3, k3, v3)
        cols = (0, 0, 0)

    kv_len = S if S_pad != S else None

    out = pl.pallas_call(
        functools.partial(_flash_attn_kernel, kv_len=kv_len, block_k=tk),
        out_shape=jax.ShapeDtypeStruct((B, S_pad, E), out_dtype),
        grid_spec=pltpu.PrefetchScalarGridSpec(
            num_scalar_prefetch=0,
            grid=(B, S_pad // tq, S_pad // tk),
            in_specs=[
                pl.BlockSpec((1, tq, E), lambda b, qi, ki, c=cols[0]: (b, qi, c)),
                pl.BlockSpec((1, tk, E), lambda b, qi, ki, c=cols[1]: (b, ki, c)),
                pl.BlockSpec((1, tk, E), lambda b, qi, ki, c=cols[2]: (b, ki, c)),
            ],
            out_specs=pl.BlockSpec((1, tq, E), lambda b, qi, ki: (b, qi, 0)),
            scratch_shapes=[
                pltpu.VMEM((tq, 128), jnp.float32),   # running max m (lane-dense)
                pltpu.VMEM((tq, 128), jnp.float32),   # running sum l (lane-dense)
                pltpu.VMEM((tq, E), jnp.float32),     # output accumulator
            ],
        ),
        compiler_params=pltpu.CompilerParams(
            dimension_semantics=("parallel", "parallel", "arbitrary"),
            vmem_limit_bytes=64 * 1024 * 1024),
    )(*flash_in)

    if S_pad != S:
        out = out[:, :S, :]
    return out


def _reference(x, wq, bq, wk, bk, wv, bv):
    q = x @ wq + bq
    k = x @ wk + bk
    v = x @ wv + bv
    s = jnp.einsum("bqe,bke->bqk", q, k) / math.sqrt(x.shape[-1])
    p = jax.nn.softmax(s, axis=-1)
    return jnp.einsum("bqk,bke->bqe", p, v)


if __name__ == "__main__":
    def make_case(key, B, S, E):
        ks = jax.random.split(key, 7)
        lim = 1.0 / math.sqrt(E)
        x = jax.random.uniform(ks[0], (B, S, E), dtype=jnp.float32)
        wq = jax.random.uniform(ks[1], (E, E), jnp.float32, -lim, lim)
        bq = jax.random.uniform(ks[2], (1, E), jnp.float32, -lim, lim)
        wk = jax.random.uniform(ks[3], (E, E), jnp.float32, -lim, lim)
        bk = jax.random.uniform(ks[4], (1, E), jnp.float32, -lim, lim)
        wv = jax.random.uniform(ks[5], (E, E), jnp.float32, -lim, lim)
        bv = jax.random.uniform(ks[6], (1, E), jnp.float32, -lim, lim)
        return x, wq, bq, wk, bk, wv, bv

    key = jax.random.PRNGKey(0)
    k1, k2 = jax.random.split(key)

    # Case 1: E multiple of 128 -> fused single-output QKV layout, no padding.
    args1 = make_case(k1, 2, 8, 128)
    out1 = jax.block_until_ready(self_attention_v1(*args1))
    ref1 = _reference(*args1)
    assert out1.shape == ref1.shape
    # bf16 MXU inputs + approx reciprocal -> compare to fp32 reference loosely.
    assert jnp.allclose(out1, ref1, atol=3e-2, rtol=3e-2), "case1 mismatch"

    # Case 2: S not a multiple of 8 -> padded sequence + key-masking path,
    # separate Q/K/V outputs (E % 128 != 0).
    args2 = make_case(k2, 2, 10, 32)
    out2 = jax.block_until_ready(self_attention_v1(*args2))
    ref2 = _reference(*args2)
    assert out2.shape == ref2.shape
    assert jnp.allclose(out2, ref2, atol=3e-2, rtol=3e-2), "case2 mismatch"

    print("KERNEL_OK")
</pallas_src>

<mosaic_0001>
module attributes {stable_mosaic.version = 11 : i64} {
  func.func @_qkv_proj_kernel(%arg0: i32, %arg1: memref<16x128xbf16, #tpu.memory_space<vmem>>, %arg2: memref<128x384xbf16, #tpu.memory_space<vmem>>, %arg3: memref<1x384xf32, #tpu.memory_space<vmem>>, %arg4: memref<16x384xbf16, #tpu.memory_space<vmem>>) attributes {dimension_semantics = [#tpu.dimension_semantics<parallel>], iteration_bounds = array<i64: 1>, scalar_prefetch = 0 : i64, scratch_operands = 0 : i64, tpu.core_type = #tpu.core_type<tc>, window_params = [{transform_indices = @transform_0, window_bounds = array<i64: 16, 128>}, {pipeline_mode = #tpu.pipeline_mode<synchronous>, transform_indices = @transform_1, window_bounds = array<i64: 128, 384>}, {pipeline_mode = #tpu.pipeline_mode<synchronous>, transform_indices = @transform_2, window_bounds = array<i64: 1, 384>}, {transform_indices = @transform_3, window_bounds = array<i64: 16, 384>}]} {
    %c0 = arith.constant 0 : index
    %c0_0 = arith.constant 0 : index
    %0 = vector.load %arg1[%c0, %c0_0] : memref<16x128xbf16, #tpu.memory_space<vmem>>, vector<16x128xbf16>
    %c0_1 = arith.constant 0 : index
    %c0_2 = arith.constant 0 : index
    %1 = vector.load %arg2[%c0_1, %c0_2] : memref<128x384xbf16, #tpu.memory_space<vmem>>, vector<128x384xbf16>
    %cst = arith.constant dense<0.000000e+00> : vector<16x384xf32>
    %2 = tpu.matmul %0, %1, %cst {dimension_numbers = #tpu.dot_dimension_numbers<[1], [0], [0], [1], [0, 0, 1, 1], [], []>} : vector<16x128xbf16>, vector<128x384xbf16>, vector<16x384xf32> -> vector<16x384xf32>
    %c0_3 = arith.constant 0 : index
    %c0_4 = arith.constant 0 : index
    %3 = vector.load %arg3[%c0_3, %c0_4] : memref<1x384xf32, #tpu.memory_space<vmem>>, vector<1x384xf32>
    %4 = vector.broadcast %3 : vector<1x384xf32> to vector<16x384xf32>
    %5 = arith.addf %2, %4 : vector<16x384xf32>
    %6 = arith.truncf %5 : vector<16x384xf32> to vector<16x384xbf16>
    %c0_5 = arith.constant 0 : index
    %c0_6 = arith.constant 0 : index
    %7 = vector.load %arg4[%c0_5, %c0_6] : memref<16x384xbf16, #tpu.memory_space<vmem>>, vector<16x384xbf16>
    tpu.vector_store %arg4[%c0_5, %c0_6], %6 {strides = array<i32>} : memref<16x384xbf16, #tpu.memory_space<vmem>>, vector<16x384xbf16>,
    return
  }
  func.func @transform_0(%arg0: i32) -> (i32, i32) {
    %c0_i32 = arith.constant 0 : i32
    %c0_i32_0 = arith.constant 0 : i32
    return %arg0, %c0_i32 : i32, i32
  }
  func.func @transform_1(%arg0: i32) -> (i32, i32) {
    %c0_i32 = arith.constant 0 : i32
    %c0_i32_0 = arith.constant 0 : i32
    %c0_i32_1 = arith.constant 0 : i32
    return %c0_i32, %c0_i32_0 : i32, i32
  }
  func.func @transform_2(%arg0: i32) -> (i32, i32) {
    %c0_i32 = arith.constant 0 : i32
    %c0_i32_0 = arith.constant 0 : i32
    %c0_i32_1 = arith.constant 0 : i32
    return %c0_i32, %c0_i32_0 : i32, i32
  }
  func.func @transform_3(%arg0: i32) -> (i32, i32) {
    %c0_i32 = arith.constant 0 : i32
    %c0_i32_0 = arith.constant 0 : i32
    return %arg0, %c0_i32 : i32, i32
  }
}

</mosaic_0001>

<llo_original>
// kernel: tpu_custom_call.1
$region0: #{tpu_custom_call.1}
  #allocation0 [shape = 'u32[]', space=smem, size = 0x4, offset = 0x4, fixed_abs, tag = 'smem constant byte address 0x4 - core index']
  #allocation1 [shape = 'u32[72,128]{1,0:T(1,128)}', space=vmem, size = 0x9000, scoped, tag = 'internal scratch']
  %s0 = inlined_call_operand.hbm [shape: bf16[16,128], index: 0, kind: input, shape index: {}]
  %s1 = inlined_call_operand.hbm [shape: bf16[128,384], index: 1, kind: input, shape index: {}]
  %s2 = inlined_call_operand.hbm [shape: f32[1,384], index: 2, kind: input, shape index: {}]
  %s3 = inlined_call_operand.hbm [shape: bf16[16,384], index: 3, kind: output, shape index: {}]
  %s4 = sld [smem:[#allocation0]]
  $region34: #{tpu_custom_call.1} parent=0
    _
  %s6 = ssub.s32 1, %s4
  %s7 = scalar_select 0, %s6, %s4
  $region1: #{tpu_custom_call.1} parent=0
    #allocation2 [shape = 'u8[4096]{0}', space=vmem, size = 0x1000, scoped, tag = 'input window, operand 0, single buffered']
    #allocation3 [shape = 's32[1]{0}', space=sflag, size = 0x4, scoped, tag = 'scoped memory for tpu_custom_call.1']
    #allocation4 [shape = 's32[1]{0}', space=sflag, size = 0x4, scoped, tag = 'scoped memory for tpu_custom_call.1']
    #allocation5 [shape = 'u8[98304]{0}', space=vmem, size = 0x18000, scoped, tag = 'input window, operand 1, single buffered']
    #allocation6 [shape = 's32[1]{0}', space=sflag, size = 0x4, scoped, tag = 'scoped memory for tpu_custom_call.1']
    #allocation7 [shape = 'u8[1536]{0}', space=vmem, size = 0x800, scoped, tag = 'input window, operand 2, single buffered']
    #allocation8 [shape = 'u8[12288]{0}', space=vmem, size = 0x3000, scoped, tag = 'output window, operand 0, single buffered']
    %8 = vsyncpa [#allocation3], 0
    %9 = vsyncpa [#allocation6], 0
    %10 = vsyncpa [#allocation4], 0
    // Predicated region
    $region2: #{tpu_custom_call.1} parent=1 // pred_check
      _
    $region3: #{tpu_custom_call.1} parent=1 // pred_check_branch
      %12 = sbr.rel (0) target = $region5
    $region4: #{tpu_custom_call.1} parent=1 // pred_region
      %14 = vsyncadd [#allocation3], 0
      %s15 = sshll.u32 %s0, 4
      %s16 = int_to_ptr.hbm [resolvable:$true] %s15
      %s17 = sshll.u32 [#allocation2], 4
      %s18 = int_to_ptr.vmem [resolvable:$true] %s17
      %23 = dma.hbm_to_vmem [thread:$0]  %s16, 128, %s18, [#allocation3], 64, 64, 4
    $region5: #{tpu_custom_call.1} parent=1 // pred_fallthru
      _
    // Predicated region
    $region6: #{tpu_custom_call.1} parent=1 // pred_check
      _
    $region7: #{tpu_custom_call.1} parent=1 // pred_check_branch
      %25 = sbr.rel (0) target = $region9
    $region8: #{tpu_custom_call.1} parent=1 // pred_region
      %27 = vsyncadd [#allocation6], 0
      %s28 = sshll.u32 %s1, 4
      %s29 = int_to_ptr.hbm [resolvable:$true] %s28
      %s30 = sshll.u32 [#allocation5], 4
      %s31 = int_to_ptr.vmem [resolvable:$true] %s30
      %36 = dma.hbm_to_vmem [thread:$0]  %s29, 3072, %s31, [#allocation6], 192, 192, 12
    $region9: #{tpu_custom_call.1} parent=1 // pred_fallthru
      _
    // Predicated region
    $region10: #{tpu_custom_call.1} parent=1 // pred_check
      _
    $region11: #{tpu_custom_call.1} parent=1 // pred_check_branch
      %38 = sbr.rel (0) target = $region13
    $region12: #{tpu_custom_call.1} parent=1 // pred_region
      %40 = vsyncadd [#allocation6], 0
      %s42 = sshll.u32 %s2, 4
      %s43 = int_to_ptr.hbm [resolvable:$true] %s42
      %s44 = sshll.u32 [#allocation7], 4
      %s45 = int_to_ptr.vmem [resolvable:$true] %s44
      %47 = dma.hbm_to_vmem [thread:$0]  %s43, 48, %s45, [#allocation6]
    $region13: #{tpu_custom_call.1} parent=1 // pred_fallthru
      _
    // Predicated region
    $region14: #{tpu_custom_call.1} parent=1 // pred_check
      _
    $region15: #{tpu_custom_call.1} parent=1 // pred_check_branch
      %49 = sbr.rel (0) target = $region17
    $region16: #{tpu_custom_call.1} parent=1 // pred_region
      %51 = dma.done [#allocation3], 128
    $region17: #{tpu_custom_call.1} parent=1 // pred_fallthru
      _
    // Predicated region
    $region18: #{tpu_custom_call.1} parent=1 // pred_check
      _
    $region19: #{tpu_custom_call.1} parent=1 // pred_check_branch
      %53 = sbr.rel (0) target = $region21
    $region20: #{tpu_custom_call.1} parent=1 // pred_region
      %55 = dma.done [#allocation6], 3072
    $region21: #{tpu_custom_call.1} parent=1 // pred_fallthru
      _
    // Predicated region
    $region22: #{tpu_custom_call.1} parent=1 // pred_check
      _
    $region23: #{tpu_custom_call.1} parent=1 // pred_check_branch
      %57 = sbr.rel (0) target = $region25
    $region24: #{tpu_custom_call.1} parent=1 // pred_region
      %59 = dma.done [#allocation6], 48
    $region25: #{tpu_custom_call.1} parent=1 // pred_fallthru
      _
    %v60 = vld [vmem:[#allocation2] sm:$0xf]
    %v61 = vld [vmem:[#allocation2 + $0x4] sm:$0xf]
    %v62 = vld [vmem:[#allocation5] sm:$0xff]
    %v63 = vld [vmem:[#allocation5 + $0x8] sm:$0xf]
    %v64 = vld [vmem:[#allocation5 + $0xc] sm:$0xff]
    %v65 = vld [vmem:[#allocation5 + $0x14] sm:$0xf]
    %v66 = vld [vmem:[#allocation5 + $0x18] sm:$0xff]
    %v67 = vld [vmem:[#allocation5 + $0x20] sm:$0xf]
    %v68 = vld [vmem:[#allocation5 + $0x24] sm:$0xff]
    %v69 = vld [vmem:[#allocation5 + $0x2c] sm:$0xf]
    %v70 = vld [vmem:[#allocation5 + $0x30] sm:$0xff]
    %v71 = vld [vmem:[#allocation5 + $0x38] sm:$0xf]
    %v72 = vld [vmem:[#allocation5 + $0x3c] sm:$0xff]
    %v73 = vld [vmem:[#allocation5 + $0x44] sm:$0xf]
    %v74 = vld [vmem:[#allocation5 + $0x48] sm:$0xff]
    %v75 = vld [vmem:[#allocation5 + $0x50] sm:$0xf]
    %v76 = vld [vmem:[#allocation5 + $0x54] sm:$0xff]
    %v77 = vld [vmem:[#allocation5 + $0x5c] sm:$0xf]
    %v78 = vld [vmem:[#allocation5 + $0x60] sm:$0xff]
    %v79 = vld [vmem:[#allocation5 + $0x68] sm:$0xf]
    %v80 = vld [vmem:[#allocation5 + $0x6c] sm:$0xff]
    %v81 = vld [vmem:[#allocation5 + $0x74] sm:$0xf]
    %v82 = vld [vmem:[#allocation5 + $0x78] sm:$0xff]
    %v83 = vld [vmem:[#allocation5 + $0x80] sm:$0xf]
    %v84 = vld [vmem:[#allocation5 + $0x84] sm:$0xff]
    %v85 = vld [vmem:[#allocation5 + $0x8c] sm:$0xf]
    %v86 = vld [vmem:[#allocation5 + $0x90] sm:$0xff]
    %v87 = vld [vmem:[#allocation5 + $0x98] sm:$0xf]
    %v88 = vld [vmem:[#allocation5 + $0x9c] sm:$0xff]
    %v89 = vld [vmem:[#allocation5 + $0xa4] sm:$0xf]
    %v90 = vld [vmem:[#allocation5 + $0xa8] sm:$0xff]
    %v91 = vld [vmem:[#allocation5 + $0xb0] sm:$0xf]
    %v92 = vld [vmem:[#allocation5 + $0xb4] sm:$0xff]
    %v93 = vld [vmem:[#allocation5 + $0xbc] sm:$0xf]
    %v94 = vld [vmem:[#allocation7] sm:$0x7]
    %v96 = vperm.slane %v94, 0
    %v97 = vperm.slane %v94, 1
    %v98 = vperm.slane %v94, 2
    %v104 = vunpack.c.l.b16 %v60
    %v105 = vunpack.c.l.b16 %v61
    %v106 = vpack.c.b16 %v105, %v104
    %v140 = vunpack.c.l.b16 %v62
    %v141 = vunpack.c.h.b16 %v62
    %v142 = vunpack.c.l.b16 %v63
    %v143 = vunpack.c.l.b16 %v64
    %v144 = vunpack.c.h.b16 %v64
    %v145 = vunpack.c.l.b16 %v65
    %v146 = vunpack.c.l.b16 %v66
    %v147 = vunpack.c.h.b16 %v66
    %v148 = vunpack.c.l.b16 %v67
    %v149 = vunpack.c.l.b16 %v68
    %v150 = vunpack.c.h.b16 %v68
    %v151 = vunpack.c.l.b16 %v69
    %v152 = vunpack.c.l.b16 %v70
    %v153 = vunpack.c.h.b16 %v70
    %v154 = vunpack.c.l.b16 %v71
    %v155 = vunpack.c.l.b16 %v72
    %v156 = vunpack.c.h.b16 %v72
    %v157 = vunpack.c.l.b16 %v73
    %v158 = vunpack.c.l.b16 %v74
    %v159 = vunpack.c.h.b16 %v74
    %v160 = vunpack.c.l.b16 %v75
    %v161 = vunpack.c.l.b16 %v76
    %v162 = vunpack.c.h.b16 %v76
    %v163 = vunpack.c.l.b16 %v77
    %v164 = vunpack.c.l.b16 %v78
    %v165 = vunpack.c.h.b16 %v78
    %v166 = vunpack.c.l.b16 %v79
    %v167 = vunpack.c.l.b16 %v80
    %v168 = vunpack.c.h.b16 %v80
    %v169 = vunpack.c.l.b16 %v81
    %v170 = vunpack.c.l.b16 %v82
    %v171 = vunpack.c.h.b16 %v82
    %v172 = vunpack.c.l.b16 %v83
    %v173 = vunpack.c.l.b16 %v84
    %v174 = vunpack.c.h.b16 %v84
    %v175 = vunpack.c.l.b16 %v85
    %v176 = vunpack.c.l.b16 %v86
    %v177 = vunpack.c.h.b16 %v86
    %v178 = vunpack.c.l.b16 %v87
    %v179 = vunpack.c.l.b16 %v88
    %v180 = vunpack.c.h.b16 %v88
    %v181 = vunpack.c.l.b16 %v89
    %v182 = vunpack.c.l.b16 %v90
    %v183 = vunpack.c.h.b16 %v90
    %v184 = vunpack.c.l.b16 %v91
    %v185 = vunpack.c.l.b16 %v92
    %v186 = vunpack.c.h.b16 %v92
    %v187 = vunpack.c.l.b16 %v93
    %v188 = vpack.c.b16 %v143, %v140
    %v189 = vpack.c.b16 %v144, %v141
    %v190 = vpack.c.b16 %v145, %v142
    %v191 = vpack.c.b16 %v149, %v146
    %v192 = vpack.c.b16 %v150, %v147
    %v193 = vpack.c.b16 %v151, %v148
    %v194 = vpack.c.b16 %v155, %v152
    %v195 = vpack.c.b16 %v156, %v153
    %v196 = vpack.c.b16 %v157, %v154
    %v197 = vpack.c.b16 %v161, %v158
    %v198 = vpack.c.b16 %v162, %v159
    %v199 = vpack.c.b16 %v163, %v160
    %v200 = vpack.c.b16 %v167, %v164
    %v201 = vpack.c.b16 %v168, %v165
    %v202 = vpack.c.b16 %v169, %v166
    %v203 = vpack.c.b16 %v173, %v170
    %v204 = vpack.c.b16 %v174, %v171
    %v205 = vpack.c.b16 %v175, %v172
    %v206 = vpack.c.b16 %v179, %v176
    %v207 = vpack.c.b16 %v180, %v177
    %v208 = vpack.c.b16 %v181, %v178
    %v209 = vpack.c.b16 %v185, %v182
    %v210 = vpack.c.b16 %v186, %v183
    %v211 = vpack.c.b16 %v187, %v184
    %236 = vmatpush.bf16.msra.mxu0 %v209
    %237 = vmatpush.bf16.msra.mxu0 %v206
    %238 = vmatpush.bf16.msra.mxu0 %v203
    %239 = vmatpush.bf16.msra.mxu0 %v200
    %240 = vmatpush.bf16.msra.mxu0 %v197
    %241 = vmatpush.bf16.msra.mxu0 %v194
    %242 = vmatpush.bf16.msra.mxu0 %v191
    %243 = vmatpush.bf16.msra.mxu0 %v188
    %244 = vmatmul.bf16.gmra.mxu0 %v106
    %v245 = vpop.f32.mrf.mxu0
    %v246 = vadd.f32 %v96, %v245
    %v247 = vpop.f32.mrf.mxu0
    %v248 = vadd.f32 %v96, %v247
    %249 = vdwg.mxu0
    %250 = vmatpush.bf16.msra.mxu0 %v210
    %251 = vmatpush.bf16.msra.mxu0 %v207
    %252 = vmatpush.bf16.msra.mxu0 %v204
    %253 = vmatpush.bf16.msra.mxu0 %v201
    %254 = vmatpush.bf16.msra.mxu0 %v198
    %255 = vmatpush.bf16.msra.mxu0 %v195
    %256 = vmatpush.bf16.msra.mxu0 %v192
    %257 = vmatpush.bf16.msra.mxu0 %v189
    %258 = vmatmul.bf16.gmra.mxu0 %v106
    %v259 = vpop.f32.mrf.mxu0
    %v260 = vadd.f32 %v97, %v259
    %v261 = vpop.f32.mrf.mxu0
    %v262 = vadd.f32 %v97, %v261
    %263 = vdwg.mxu0
    %264 = vmatpush.bf16.msra.mxu0 %v211
    %265 = vmatpush.bf16.msra.mxu0 %v208
    %266 = vmatpush.bf16.msra.mxu0 %v205
    %267 = vmatpush.bf16.msra.mxu0 %v202
    %268 = vmatpush.bf16.msra.mxu0 %v199
    %269 = vmatpush.bf16.msra.mxu0 %v196
    %270 = vmatpush.bf16.msra.mxu0 %v193
    %271 = vmatpush.bf16.msra.mxu0 %v190
    %272 = vmatmul.bf16.gmra.mxu0 %v106
    %v273 = vpop.f32.mrf.mxu0
    %v274 = vadd.f32 %v98, %v273
    %v275 = vpop.f32.mrf.mxu0
    %v276 = vadd.f32 %v98, %v275
    %277 = vdwg.mxu0
    %v278 = vpack.c.bf16 %v260, %v246
    %v279 = vpack.c.bf16 %v274, %v274
    %v280 = vpack.c.bf16 %v262, %v248
    %v281 = vpack.c.bf16 %v276, %v276
    %282 = vst [vmem:[#allocation8] sm:$0xff] %v278
    %283 = vst [vmem:[#allocation8 + $0x8] sm:$0xf] %v279
    %284 = vst [vmem:[#allocation8 + $0xc] sm:$0xff] %v280
    %285 = vst [vmem:[#allocation8 + $0x14] sm:$0xf] %v281
    // Predicated region
    $region26: #{tpu_custom_call.1} parent=1 // pred_check
      _
    $region27: #{tpu_custom_call.1} parent=1 // pred_check_branch
      %287 = sbr.rel (0) target = $region29
    $region28: #{tpu_custom_call.1} parent=1 // pred_region
      %289 = vsyncadd [#allocation4], 0
      %s290 = sshll.u32 [#allocation8], 4
      %s291 = int_to_ptr.vmem [resolvable:$true] %s290
      %s292 = sshll.u32 %s3, 4
      %s293 = int_to_ptr.hbm [resolvable:$true] %s292
      %298 = dma.vmem_to_hbm [thread:$0]  %s291, 384, %s293, [#allocation4], 192, 192, 12
    $region29: #{tpu_custom_call.1} parent=1 // pred_fallthru
      _
    // Predicated region
    $region30: #{tpu_custom_call.1} parent=1 // pred_check
      _
    $region31: #{tpu_custom_call.1} parent=1 // pred_check_branch
      %300 = sbr.rel (0) target = $region33
    $region32: #{tpu_custom_call.1} parent=1 // pred_region
      %302 = dma.done [#allocation4], 384
    $region33: #{tpu_custom_call.1} parent=1 // pred_fallthru
      _
    %303 = vsyncpa [#allocation3], 1
    %304 = vsyncpa [#allocation6], 1
    %305 = vsyncpa [#allocation4], 1

</llo_original>
